<compile_context>
chip_gen: v7x
topology: tpu7x:2x2x1
jax: 0.10.0
libtpu: 0.0.40
codegen_flags: <defaults>
</compile_context>

<pallas_src>
import jax
import jax.numpy as jnp
import numpy as np
from jax.experimental import pallas as pl
from jax.experimental.pallas import tpu as pltpu


# ---------------------------------------------------------------------------
# Kernels
# ---------------------------------------------------------------------------
def _softmax_hash_kernel(x_ref, o_ref):
    x = x_ref[...].astype(jnp.float32)          # (tb, td) block, td even
    n = x.shape[-1]                              # static block width
    axis = x.ndim - 1                            # pltpu.roll needs axis >= 0
    # (1, td) lane-parity mask (broadcasts over rows) -- no full-block iota.
    lane = jax.lax.broadcasted_iota(jnp.int32, (1, n), 1)
    even = (lane & 1) == 0
    # Even lane i pairs with i+1, odd lane i pairs with i-1.  pltpu.roll
    # requires non-negative shifts: shift by n-1 == cyclic shift by -1.
    partner = jnp.where(
        even,
        pltpu.roll(x, shift=n - 1, axis=axis),   # even lane i -> x[i+1]
        pltpu.roll(x, shift=1, axis=axis),       # odd  lane i -> x[i-1]
    )
    # softmax over each (even, odd) pair:
    #   exp(x) / (exp(x) + exp(partner)) == sigmoid(x - partner)
    # Exact and numerically stable; matches torch.softmax on the (B, K, 2)
    # view.  Ragged last B-block feeds padded garbage through sigmoid, but the
    # op is purely element-wise and the padded rows are never stored.
    o_ref[...] = jax.nn.sigmoid(x - partner).astype(o_ref.dtype)


def _make_tanh_kernel(compute_dtype):
    def kernel(x_ref, o_ref):
        o_ref[...] = jnp.tanh(x_ref[...].astype(compute_dtype)).astype(o_ref.dtype)
    return kernel


# ---------------------------------------------------------------------------
# Hardware queries (defensive: fall back to the most conservative assumption)
# ---------------------------------------------------------------------------
def _vmem_cap_bytes():
    """Scoped-VMEM ceiling with headroom under physical VMEM."""
    try:
        phys = int(pltpu.get_tpu_info().vmem_capacity_bytes)
    except Exception:
        phys = 64 * 2**20                        # assume smallest (v7x)
    return int(min(64 * 2**20, max(16 * 2**20, phys - 16 * 2**20)))


def _native_bf16_ok():
    """bf16 VPU/EUP exists on v6e/v7x; keep f32 compute elsewhere/unknown."""
    try:
        kind = jax.devices()[0].device_kind.lower()
    except Exception:
        return False
    return ("v6" in kind) or ("v7" in kind)


# ---------------------------------------------------------------------------
# Tiling / wrapper
# ---------------------------------------------------------------------------
_SUBLANE_PACK = {4: 8, 2: 16, 1: 32}             # itemsize -> sublane packing
_TARGET_BLOCK_BYTES = 4 * 2**20                  # ~4 MiB per I/O buffer


def _round_up(x, m):
    return -(-x // m) * m


def _choose_tiles(B, D, itemsize):
    pack = _SUBLANE_PACK.get(itemsize, 8)
    row_bytes = D * itemsize

    # Prefer full-row blocks (td == D): long contiguous DMA segments and wide
    # unmasked stores.  Only tile D when a minimal (pack, D) slab would not
    # fit the per-block budget (and D is 128-tileable).
    if pack * row_bytes <= _TARGET_BLOCK_BYTES or D % 128 != 0:
        td = D
    else:
        td = D
        for m in range(D // 128, 0, -1):         # largest 128-multiple divisor
            c = m * 128
            if D % c == 0 and pack * c * itemsize <= _TARGET_BLOCK_BYTES:
                td = c
                break

    # B tile: enough rows for ~_TARGET_BLOCK_BYTES per buffer, rounded to the
    # dtype's sublane packing; a full-B block is always layout-legal.
    tb = max(pack, (_TARGET_BLOCK_BYTES // (td * itemsize)) // pack * pack)
    if tb >= B:
        tb = B

    # For large arrays, guarantee enough grid steps for double-buffering (>=4)
    # and bias the leading "parallel" axis toward an even step count so v7x's
    # two TensorCores both get work.
    total_bytes = B * row_bytes
    if total_bytes >= 2 * _TARGET_BLOCK_BYTES:
        while pl.cdiv(B, tb) * pl.cdiv(D, td) < 4 and tb > pack:
            tb = max(pack, (tb // 2) // pack * pack)
        gb = pl.cdiv(B, tb)
        if gb > 1 and gb % 2 == 1:
            tb_alt = max(pack, _round_up(pl.cdiv(B, gb + 1), pack))
            if tb_alt < B and pl.cdiv(B, tb_alt) % 2 == 0:
                tb = tb_alt
    return tb, td


def _elementwise_call(kernel, embeds, block_b=None, block_d=None,
                      pairwise=False):
    B, D = embeds.shape
    itemsize = jnp.dtype(embeds.dtype).itemsize
    tb_auto, td_auto = _choose_tiles(B, D, itemsize)
    tb = min(block_b, B) if block_b is not None else tb_auto
    td = min(block_d, D) if block_d is not None else td_auto
    if pairwise:
        # (even, odd) pairs must never straddle a D-tile boundary.
        assert td % 2 == 0 and D % td == 0, (td, D)

    grid = (pl.cdiv(B, tb), pl.cdiv(D, td))

    # VMEM budget: double-buffered in+out tiles plus f32 intermediates
    # (upcast, rolls, sigmoid/tanh temp), capped by the generation-aware limit.
    per_buf = tb * td * itemsize
    f32_buf = tb * td * 4
    vmem_limit = int(min(_vmem_cap_bytes(),
                         max(16 * 2**20,
                             4 * per_buf + 3 * f32_buf + 2 * 2**20)))

    return pl.pallas_call(
        kernel,
        out_shape=jax.ShapeDtypeStruct((B, D), embeds.dtype),
        grid_spec=pl.GridSpec(
            grid=grid,
            in_specs=[pl.BlockSpec((tb, td), lambda i, j: (i, j))],
            out_specs=pl.BlockSpec((tb, td), lambda i, j: (i, j)),
        ),
        compiler_params=pltpu.CompilerParams(
            dimension_semantics=("parallel", "parallel"),
            vmem_limit_bytes=vmem_limit),
    )(embeds)


def softmax_hash(embeds, return_vector=True, block_b=None, block_d=None):
    # PyTorch: view(B, -1, 2) -> softmax(dim=-1) -> view(B, -1)
    if embeds.ndim != 2:
        assert embeds.shape[-1] == 2, (
            f"softmax hash must input a shape of B,K,2m. It is {embeds.shape}")
        embeds = embeds.reshape(embeds.shape[0], -1)
    B, D = embeds.shape
    assert D % 2 == 0, "softmax_hash needs an even feature dimension"
    out = _elementwise_call(_softmax_hash_kernel, embeds,
                            block_b=block_b, block_d=block_d, pairwise=True)
    if return_vector:
        return out                      # (B, D) -- preferred TPU layout
    # NOTE: a last-dim-of-2 layout is poor on TPU; only reshape when the
    # caller explicitly asks for the (B, K, 2) view (spec parity).
    return out.reshape(B, D // 2, 2)


def tanh_hash(embeds, block_b=None, block_d=None):
    # bf16-native compute on v6e/v7x (halves intermediate footprint); f32
    # upcast elsewhere (v5e EUP/VPU lack bf16) -- always exact enough.
    if embeds.dtype == jnp.bfloat16 and _native_bf16_ok():
        compute_dtype = jnp.bfloat16
    else:
        compute_dtype = jnp.float32
    return _elementwise_call(_make_tanh_kernel(compute_dtype), embeds,
                             block_b=block_b, block_d=block_d)


class Hash:
    """JAX/Pallas mirror of TwDH.Hash."""

    def __init__(self, hash_func=None, merge_func=None):
        assert hash_func is not None, "'hash_func': hash function must be provided!"
        if hash_func == 'softmax':
            self.hash_func = softmax_hash
        else:
            self.hash_func = tanh_hash
        self.merge_func = merge_func  # DiHE merge; None -> identity path

    def __call__(self, embeds):
        if self.merge_func is None:
            return self.hash_func(embeds)
        return self.hash_func(self.merge_func(embeds))


# ---------------------------------------------------------------------------
# Pure-JAX references
# ---------------------------------------------------------------------------
def _softmax_hash_ref(x):
    B, D = x.shape
    p = jax.nn.softmax(x.reshape(B, D // 2, 2).astype(jnp.float32), axis=-1)
    return p.reshape(B, D)


def _tanh_hash_ref(x):
    return jnp.tanh(x.astype(jnp.float32))


if __name__ == "__main__":
    key = jax.random.PRNGKey(0)
    k0, k1, k2, k3 = jax.random.split(key, 4)

    # --- softmax variant, 2-D f32 input ------------------------------------
    B, D = 8, 128
    embeds = jax.random.normal(k0, (B, D), dtype=jnp.float32)
    hash_softmax = Hash(hash_func='softmax')
    out_sm = jax.block_until_ready(hash_softmax(embeds))
    ref_sm = _softmax_hash_ref(embeds)
    assert out_sm.shape == (B, D)
    np.testing.assert_allclose(np.asarray(out_sm), np.asarray(ref_sm),
                               rtol=1e-6, atol=2e-6)

    # --- softmax variant, 3-D (B, K, 2) input, return_vector=False ---------
    embeds_3d = jax.random.normal(k1, (4, 64, 2), dtype=jnp.float32)
    out_3d = jax.block_until_ready(softmax_hash(embeds_3d, return_vector=False))
    ref_3d = _softmax_hash_ref(embeds_3d.reshape(4, -1)).reshape(4, 64, 2)
    assert out_3d.shape == (4, 64, 2)
    np.testing.assert_allclose(np.asarray(out_3d), np.asarray(ref_3d),
                               rtol=1e-6, atol=2e-6)

    # --- softmax variant, moderate shape (exercises multi-block grid) ------
    embeds_big = jax.random.normal(k3, (2048, 2048), dtype=jnp.float32)
    out_big = jax.block_until_ready(hash_softmax(embeds_big))
    ref_big = _softmax_hash_ref(embeds_big)
    np.testing.assert_allclose(np.asarray(out_big), np.asarray(ref_big),
                               rtol=1e-6, atol=2e-6)

    # --- tanh variant, f32 ---------------------------------------------------
    hash_tanh = Hash(hash_func='tanh')
    out_th = jax.block_until_ready(hash_tanh(embeds))
    ref_th = _tanh_hash_ref(embeds)
    np.testing.assert_allclose(np.asarray(out_th), np.asarray(ref_th),
                               rtol=1e-5, atol=1e-5)

    # --- tanh variant, bf16 (exercises sublane-packed dtype path) ----------
    embeds_bf16 = jax.random.normal(k2, (16, 256), dtype=jnp.bfloat16)
    out_bf = jax.block_until_ready(hash_tanh(embeds_bf16))
    ref_bf = _tanh_hash_ref(embeds_bf16)
    np.testing.assert_allclose(np.asarray(out_bf, dtype=np.float32),
                               np.asarray(ref_bf), rtol=0, atol=1e-2)

    print("KERNEL_OK")
</pallas_src>

<mosaic_0001>
module attributes {stable_mosaic.version = 11 : i64} {
  func.func @_softmax_hash_kernel(%arg0: i32, %arg1: i32, %arg2: memref<8x128xf32, #tpu.memory_space<vmem>>, %arg3: memref<8x128xf32, #tpu.memory_space<vmem>>) attributes {dimension_semantics = [#tpu.dimension_semantics<parallel>, #tpu.dimension_semantics<parallel>], iteration_bounds = array<i64: 1, 1>, scalar_prefetch = 0 : i64, scratch_operands = 0 : i64, tpu.core_type = #tpu.core_type<tc>, window_params = [{transform_indices = @transform_0, window_bounds = array<i64: 8, 128>}, {transform_indices = @transform_1, window_bounds = array<i64: 8, 128>}]} {
    %c0 = arith.constant 0 : index
    %c0_0 = arith.constant 0 : index
    %0 = vector.load %arg2[%c0, %c0_0] : memref<8x128xf32, #tpu.memory_space<vmem>>, vector<8x128xf32>
    %1 = tpu.iota {dimensions = array<i32: 1>} : vector<1x128xi32>
    %c1_i32 = arith.constant 1 : i32
    %2 = vector.broadcast %c1_i32 : i32 to vector<1x128xi32>
    %3 = arith.andi %1, %2 : vector<1x128xi32>
    %c0_i32 = arith.constant 0 : i32
    %4 = vector.broadcast %c0_i32 : i32 to vector<1x128xi32>
    %5 = arith.cmpi eq, %3, %4 : vector<1x128xi32>
    %c127_i32 = arith.constant 127 : i32
    %6 = tpu.dynamic_rotate %0 by %c127_i32 dim 1 : vector<8x128xf32>, i32 -> vector<8x128xf32>
    %c1_i32_1 = arith.constant 1 : i32
    %7 = tpu.dynamic_rotate %0 by %c1_i32_1 dim 1 : vector<8x128xf32>, i32 -> vector<8x128xf32>
    %8 = vector.shape_cast %5 : vector<1x128xi1> to vector<1x128xi1>
    %9 = vector.broadcast %8 : vector<1x128xi1> to vector<8x128xi1>
    %10 = arith.select %9, %6, %7 : vector<8x128xi1>, vector<8x128xf32>
    %11 = arith.subf %0, %10 : vector<8x128xf32>
    %12 = arith.negf %11 : vector<8x128xf32>
    %13 = math.exp %12 : vector<8x128xf32>
    %cst = arith.constant 1.000000e+00 : f32
    %14 = vector.broadcast %cst : f32 to vector<8x128xf32>
    %15 = arith.addf %14, %13 : vector<8x128xf32>
    %16 = arith.divf %14, %15 : vector<8x128xf32>
    %c0_2 = arith.constant 0 : index
    %c0_3 = arith.constant 0 : index
    %17 = vector.load %arg3[%c0_2, %c0_3] : memref<8x128xf32, #tpu.memory_space<vmem>>, vector<8x128xf32>
    tpu.vector_store %arg3[%c0_2, %c0_3], %16 {strides = array<i32>} : memref<8x128xf32, #tpu.memory_space<vmem>>, vector<8x128xf32>,
    return
  }
  func.func @transform_0(%arg0: i32, %arg1: i32) -> (i32, i32) {
    %c0_i32 = arith.constant 0 : i32
    return %arg0, %arg1 : i32, i32
  }
  func.func @transform_1(%arg0: i32, %arg1: i32) -> (i32, i32) {
    %c0_i32 = arith.constant 0 : i32
    return %arg0, %arg1 : i32, i32
  }
}

</mosaic_0001>

<llo_original>
// kernel: tpu_custom_call.1
$region0: #{tpu_custom_call.1}
  #allocation0 [shape = 'u32[]', space=smem, size = 0x4, offset = 0x4, fixed_abs, tag = 'smem constant byte address 0x4 - core index']
  #allocation1 [shape = 'u32[144,128]{1,0:T(1,128)}', space=vmem, size = 0x12000, scoped, tag = 'internal scratch']
  %s0 = inlined_call_operand.hbm [shape: f32[8,128], index: 0, kind: input, shape index: {}]
  %s1 = inlined_call_operand.hbm [shape: f32[8,128], index: 1, kind: output, shape index: {}]
  %s2 = sld [smem:[#allocation0]]
  $region18: #{tpu_custom_call.1} parent=0
    _
  %s4 = ssub.s32 1, %s2
  %s5 = scalar_select 0, %s4, %s2
  $region1: #{tpu_custom_call.1} parent=0
    #allocation2 [shape = 'u8[4096]{0}', space=vmem, size = 0x1000, scoped, tag = 'input window, operand 0, single buffered']
    #allocation3 [shape = 's32[1]{0}', space=sflag, size = 0x4, scoped, tag = 'scoped memory for tpu_custom_call.1']
    #allocation4 [shape = 's32[1]{0}', space=sflag, size = 0x4, scoped, tag = 'scoped memory for tpu_custom_call.1']
    #allocation5 [shape = 'u8[4096]{0}', space=vmem, size = 0x1000, scoped, tag = 'output window, operand 0, single buffered']
    %6 = vsyncpa [#allocation3], 0
    %7 = vsyncpa [#allocation4], 0
    // Predicated region
    $region2: #{tpu_custom_call.1} parent=1 // pred_check
      _
    $region3: #{tpu_custom_call.1} parent=1 // pred_check_branch
      %9 = sbr.rel (0) target = $region5
    $region4: #{tpu_custom_call.1} parent=1 // pred_region
      %s11 = ssub.s32 128, 128
      %12 = vsyncadd [#allocation3], %s11
      %s14 = sshll.u32 [#allocation2], 4
      %s15 = int_to_ptr.vmem [resolvable:$true] %s14
      %17 = dma.hbm_to_vmem [thread:$0]  %s0, 128, %s15, [#allocation3]
    $region5: #{tpu_custom_call.1} parent=1 // pred_fallthru
      _
    // Predicated region
    $region6: #{tpu_custom_call.1} parent=1 // pred_check
      _
    $region7: #{tpu_custom_call.1} parent=1 // pred_check_branch
      %19 = sbr.rel (0) target = $region9
    $region8: #{tpu_custom_call.1} parent=1 // pred_region
      %20 = dma.done [#allocation3], 128
    $region9: #{tpu_custom_call.1} parent=1 // pred_fallthru
      _
    %v21 = vld [vmem:[#allocation2] sm:$0xff]
    %v22 = vlaneseq
    %v23 = vand.u32 %v22, 127
    %v24 = vand.u32 %v23, 1
    %vm25 = vcmp.eq.s32.totalorder %v24, 0
    %26 = vrot.lane.b32.xlu0 %v21, 127
    %v27 = vpop.permute.xlu0 %26
    %28 = vrot.lane.b32.xlu0 %v21, 1
    %v29 = vpop.permute.xlu0 %28
    %v30 = vsel %vm25, 1, 0
    %vm31 = vcmp.eq.s32.totalorder %v30, 1
    %v32 = vsel %vm31, %v27, %v29
    %v33 = vsub.f32 %v21, %v32
    %v34 = vxor.u32 %v33, 2147483648
    %v35 = vmul.f32 %v34, 1.442695
    %v36 = vpow.pop %v35
    %v37 = vadd.f32 %v36, 1.0
    %v38 = vrcp.pop %v37
    %v39 = vmul.f32 1.0, %v38
    %40 = vst [vmem:[#allocation5] sm:$0xff] %v39
    // Predicated region
    $region10: #{tpu_custom_call.1} parent=1 // pred_check
      _
    $region11: #{tpu_custom_call.1} parent=1 // pred_check_branch
      %42 = sbr.rel (0) target = $region13
    $region12: #{tpu_custom_call.1} parent=1 // pred_region
      %s44 = ssub.s32 128, 128
      %45 = vsyncadd [#allocation4], %s44
      %s47 = sshll.u32 [#allocation5], 4
      %s48 = int_to_ptr.vmem [resolvable:$true] %s47
      %50 = dma.vmem_to_hbm [thread:$0]  %s48, 128, %s1, [#allocation4]
    $region13: #{tpu_custom_call.1} parent=1 // pred_fallthru
      _
    // Predicated region
    $region14: #{tpu_custom_call.1} parent=1 // pred_check
      _
    $region15: #{tpu_custom_call.1} parent=1 // pred_check_branch
      %52 = sbr.rel (0) target = $region17
    $region16: #{tpu_custom_call.1} parent=1 // pred_region
      %53 = dma.done [#allocation4], 128
    $region17: #{tpu_custom_call.1} parent=1 // pred_fallthru
      _
    %54 = vsyncpa [#allocation3], 1
    %55 = vsyncpa [#allocation4], 1

</llo_original>
